<compile_context>
chip_gen: v7x
topology: tpu7x:2x2x1
jax: 0.10.0
libtpu: 0.0.40
codegen_flags: <defaults>
</compile_context>

<pallas_src>
import functools

import jax
import jax.numpy as jnp
from jax.experimental import pallas as pl
from jax.experimental.pallas import tpu as pltpu

_SQRT_2_OVER_PI = 0.7978845608028654


def _gelu_tanh(h):
    return 0.5 * h * (1.0 + jnp.tanh(_SQRT_2_OVER_PI * (h + 0.044715 * h * h * h)))


def _ffn_kernel(x_ref, w1_ref, b1_ref, w2_ref, b2_ref, gamma_ref, beta_ref,
                out_ref, *, eps):
    x = x_ref[...]                                                  # (TM, H) f32

    # fc1 + GELU  (MXU matmul, f32 accumulate)
    h = jnp.dot(x, w1_ref[...], preferred_element_type=jnp.float32) + b1_ref[...]
    h = _gelu_tanh(h)                                               # (TM, F)

    # fc2 + residual
    y = jnp.dot(h, w2_ref[...], preferred_element_type=jnp.float32)
    y = y + b2_ref[...] + x                                         # (TM, H)

    # LayerNorm over the hidden axis
    mu = jnp.mean(y, axis=-1, keepdims=True)
    d = y - mu
    var = jnp.mean(d * d, axis=-1, keepdims=True)
    out_ref[...] = (d * jax.lax.rsqrt(var + eps) * gamma_ref[...]
                    + beta_ref[...]).astype(out_ref.dtype)


class PositionWiseFeedForwardPallas:
    """Inference-mode PositionWiseFeedForward, fused into one Pallas kernel."""

    def __init__(self, hidden_dim: int, ffn_hidden_dim: int, eps: float = 1e-6,
                 key=None):
        self.hidden_dim = hidden_dim
        self.ffn_hidden_dim = ffn_hidden_dim
        self.eps = eps
        if key is None:
            key = jax.random.PRNGKey(0)
        k1, k2, k3, k4 = jax.random.split(key, 4)
        # nn.Linear default init: U(-1/sqrt(fan_in), 1/sqrt(fan_in)).
        lim1 = 1.0 / (hidden_dim ** 0.5)
        lim2 = 1.0 / (ffn_hidden_dim ** 0.5)
        # Stored pre-transposed so the kernel does plain row-major matmuls.
        self.w1 = jax.random.uniform(k1, (hidden_dim, ffn_hidden_dim),
                                     jnp.float32, -lim1, lim1)
        self.b1 = jax.random.uniform(k2, (1, ffn_hidden_dim),
                                     jnp.float32, -lim1, lim1)
        self.w2 = jax.random.uniform(k3, (ffn_hidden_dim, hidden_dim),
                                     jnp.float32, -lim2, lim2)
        self.b2 = jax.random.uniform(k4, (1, hidden_dim),
                                     jnp.float32, -lim2, lim2)
        # LayerNorm affine params (PyTorch default init).
        self.gamma = jnp.ones((1, hidden_dim), jnp.float32)
        self.beta = jnp.zeros((1, hidden_dim), jnp.float32)

    def __call__(self, x: jax.Array, tile_m: int = 512) -> jax.Array:
        H, F = self.hidden_dim, self.ffn_hidden_dim
        orig_shape = x.shape
        assert orig_shape[-1] == H
        x2 = x.reshape(-1, H).astype(jnp.float32)                   # (M, H)
        M = x2.shape[0]

        # Clamp tile to the (8-aligned) problem size, then pad M to a multiple.
        tm = min(tile_m, max(8, ((M + 7) // 8) * 8))
        tm = ((tm + 7) // 8) * 8
        pad = (-M) % tm
        if pad:
            x2 = jnp.pad(x2, ((0, pad), (0, 0)))
        Mp = x2.shape[0]
        grid = (Mp // tm,)

        cost = pl.CostEstimate(
            flops=4 * Mp * H * F + 12 * Mp * H,
            transcendentals=Mp * F + Mp,
            bytes_accessed=4 * (2 * Mp * H + 2 * H * F + 2 * F + 4 * H),
        )

        out = pl.pallas_call(
            functools.partial(_ffn_kernel, eps=self.eps),
            out_shape=jax.ShapeDtypeStruct((Mp, H), jnp.float32),
            grid=grid,
            in_specs=[
                pl.BlockSpec((tm, H), lambda i: (i, 0)),    # x tile
                pl.BlockSpec((H, F), lambda i: (0, 0)),     # W1 (resident)
                pl.BlockSpec((1, F), lambda i: (0, 0)),     # b1
                pl.BlockSpec((F, H), lambda i: (0, 0)),     # W2 (resident)
                pl.BlockSpec((1, H), lambda i: (0, 0)),     # b2
                pl.BlockSpec((1, H), lambda i: (0, 0)),     # ln gamma
                pl.BlockSpec((1, H), lambda i: (0, 0)),     # ln beta
            ],
            out_specs=pl.BlockSpec((tm, H), lambda i: (i, 0)),
            compiler_params=pltpu.CompilerParams(
                dimension_semantics=("parallel",)),
            cost_estimate=cost,
        )(x2, self.w1, self.b1, self.w2, self.b2, self.gamma, self.beta)

        if pad:
            out = out[:M]
        return out.reshape(orig_shape)


def _reference(x, w1, b1, w2, b2, gamma, beta, eps=1e-6):
    x2 = x.astype(jnp.float32)
    h = x2 @ w1 + b1
    h = _gelu_tanh(h)
    y = h @ w2 + b2 + x2
    mu = jnp.mean(y, axis=-1, keepdims=True)
    var = jnp.mean((y - mu) ** 2, axis=-1, keepdims=True)
    return (y - mu) * jax.lax.rsqrt(var + eps) * gamma + beta


if __name__ == "__main__":
    key = jax.random.PRNGKey(0)
    kx, kp = jax.random.split(key)

    # Small transformer-ish shapes: batch=2, seq=64, hidden=128, ffn_hidden=256.
    B, S, H, F = 2, 64, 128, 256
    x = jax.random.normal(kx, (B, S, H), dtype=jnp.float32)

    ffn = PositionWiseFeedForwardPallas(hidden_dim=H, ffn_hidden_dim=F, key=kp)
    out = ffn(x)
    out = jax.block_until_ready(out)

    ref = _reference(x.reshape(-1, H), ffn.w1, ffn.b1, ffn.w2, ffn.b2,
                     ffn.gamma, ffn.beta).reshape(B, S, H)

    assert out.shape == (B, S, H), out.shape
    assert jnp.allclose(out, ref, atol=2e-4, rtol=2e-4), float(
        jnp.max(jnp.abs(out - ref)))
    print("KERNEL_OK")
</pallas_src>

<mosaic_0001>
module attributes {stable_mosaic.version = 11 : i64} {
  func.func @_ffn_kernel(%arg0: i32, %arg1: memref<128x128xf32, #tpu.memory_space<vmem>>, %arg2: memref<128x256xf32, #tpu.memory_space<vmem>>, %arg3: memref<1x256xf32, #tpu.memory_space<vmem>>, %arg4: memref<256x128xf32, #tpu.memory_space<vmem>>, %arg5: memref<1x128xf32, #tpu.memory_space<vmem>>, %arg6: memref<1x128xf32, #tpu.memory_space<vmem>>, %arg7: memref<1x128xf32, #tpu.memory_space<vmem>>, %arg8: memref<128x128xf32, #tpu.memory_space<vmem>>) attributes {dimension_semantics = [#tpu.dimension_semantics<parallel>], iteration_bounds = array<i64: 1>, scalar_prefetch = 0 : i64, scratch_operands = 0 : i64, tpu.core_type = #tpu.core_type<tc>, window_params = [{transform_indices = @transform_0, window_bounds = array<i64: 128, 128>}, {pipeline_mode = #tpu.pipeline_mode<synchronous>, transform_indices = @transform_1, window_bounds = array<i64: 128, 256>}, {pipeline_mode = #tpu.pipeline_mode<synchronous>, transform_indices = @transform_2, window_bounds = array<i64: 1, 256>}, {pipeline_mode = #tpu.pipeline_mode<synchronous>, transform_indices = @transform_3, window_bounds = array<i64: 256, 128>}, {pipeline_mode = #tpu.pipeline_mode<synchronous>, transform_indices = @transform_4, window_bounds = array<i64: 1, 128>}, {pipeline_mode = #tpu.pipeline_mode<synchronous>, transform_indices = @transform_5, window_bounds = array<i64: 1, 128>}, {pipeline_mode = #tpu.pipeline_mode<synchronous>, transform_indices = @transform_6, window_bounds = array<i64: 1, 128>}, {transform_indices = @transform_7, window_bounds = array<i64: 128, 128>}]} {
    %c0 = arith.constant 0 : index
    %c0_0 = arith.constant 0 : index
    %0 = vector.load %arg1[%c0, %c0_0] : memref<128x128xf32, #tpu.memory_space<vmem>>, vector<128x128xf32>
    %c0_1 = arith.constant 0 : index
    %c0_2 = arith.constant 0 : index
    %1 = vector.load %arg2[%c0_1, %c0_2] : memref<128x256xf32, #tpu.memory_space<vmem>>, vector<128x256xf32>
    %cst = arith.constant dense<0.000000e+00> : vector<128x256xf32>
    %2 = tpu.matmul %0, %1, %cst {dimension_numbers = #tpu.dot_dimension_numbers<[1], [0], [0], [1], [0, 0, 1, 1], [], []>} : vector<128x128xf32>, vector<128x256xf32>, vector<128x256xf32> -> vector<128x256xf32>
    %c0_3 = arith.constant 0 : index
    %c0_4 = arith.constant 0 : index
    %3 = vector.load %arg3[%c0_3, %c0_4] : memref<1x256xf32, #tpu.memory_space<vmem>>, vector<1x256xf32>
    %4 = vector.broadcast %3 : vector<1x256xf32> to vector<128x256xf32>
    %5 = arith.addf %2, %4 : vector<128x256xf32>
    %cst_5 = arith.constant 5.000000e-01 : f32
    %6 = vector.broadcast %cst_5 : f32 to vector<128x256xf32>
    %7 = arith.mulf %6, %5 : vector<128x256xf32>
    %cst_6 = arith.constant 4.471500e-02 : f32
    %8 = vector.broadcast %cst_6 : f32 to vector<128x256xf32>
    %9 = arith.mulf %8, %5 : vector<128x256xf32>
    %10 = arith.mulf %9, %5 : vector<128x256xf32>
    %11 = arith.mulf %10, %5 : vector<128x256xf32>
    %12 = arith.addf %5, %11 : vector<128x256xf32>
    %cst_7 = arith.constant 0.797884583 : f32
    %13 = vector.broadcast %cst_7 : f32 to vector<128x256xf32>
    %14 = arith.mulf %13, %12 : vector<128x256xf32>
    %15 = math.tanh %14 : vector<128x256xf32>
    %cst_8 = arith.constant 1.000000e+00 : f32
    %16 = vector.broadcast %cst_8 : f32 to vector<128x256xf32>
    %17 = arith.addf %16, %15 : vector<128x256xf32>
    %18 = arith.mulf %7, %17 : vector<128x256xf32>
    %c0_9 = arith.constant 0 : index
    %c0_10 = arith.constant 0 : index
    %19 = vector.load %arg4[%c0_9, %c0_10] : memref<256x128xf32, #tpu.memory_space<vmem>>, vector<256x128xf32>
    %cst_11 = arith.constant dense<0.000000e+00> : vector<128x128xf32>
    %20 = tpu.matmul %18, %19, %cst_11 {dimension_numbers = #tpu.dot_dimension_numbers<[1], [0], [0], [1], [0, 0, 1, 1], [], []>} : vector<128x256xf32>, vector<256x128xf32>, vector<128x128xf32> -> vector<128x128xf32>
    %c0_12 = arith.constant 0 : index
    %c0_13 = arith.constant 0 : index
    %21 = vector.load %arg5[%c0_12, %c0_13] : memref<1x128xf32, #tpu.memory_space<vmem>>, vector<1x128xf32>
    %22 = vector.broadcast %21 : vector<1x128xf32> to vector<128x128xf32>
    %23 = arith.addf %20, %22 : vector<128x128xf32>
    %24 = arith.addf %23, %0 : vector<128x128xf32>
    %cst_14 = arith.constant dense<0.000000e+00> : vector<128xf32>
    %25 = vector.multi_reduction <add>, %24, %cst_14 [1] : vector<128x128xf32> to vector<128xf32>
    %26 = vector.shape_cast %25 : vector<128xf32> to vector<128x1xf32>
    %cst_15 = arith.constant 1.280000e+02 : f32
    %27 = vector.broadcast %cst_15 : f32 to vector<128x1xf32>
    %28 = arith.divf %26, %27 : vector<128x1xf32>
    %29 = vector.broadcast %28 : vector<128x1xf32> to vector<128x128xf32>
    %30 = arith.subf %24, %29 : vector<128x128xf32>
    %31 = arith.mulf %30, %30 : vector<128x128xf32>
    %cst_16 = arith.constant dense<0.000000e+00> : vector<128xf32>
    %32 = vector.multi_reduction <add>, %31, %cst_16 [1] : vector<128x128xf32> to vector<128xf32>
    %33 = vector.shape_cast %32 : vector<128xf32> to vector<128x1xf32>
    %cst_17 = arith.constant 1.280000e+02 : f32
    %34 = vector.broadcast %cst_17 : f32 to vector<128x1xf32>
    %35 = arith.divf %33, %34 : vector<128x1xf32>
    %cst_18 = arith.constant 9.99999997E-7 : f32
    %36 = vector.broadcast %cst_18 : f32 to vector<128x1xf32>
    %37 = arith.addf %35, %36 : vector<128x1xf32>
    %38 = math.rsqrt %37 : vector<128x1xf32>
    %39 = vector.broadcast %38 : vector<128x1xf32> to vector<128x128xf32>
    %40 = arith.mulf %30, %39 : vector<128x128xf32>
    %c0_19 = arith.constant 0 : index
    %c0_20 = arith.constant 0 : index
    %41 = vector.load %arg6[%c0_19, %c0_20] : memref<1x128xf32, #tpu.memory_space<vmem>>, vector<1x128xf32>
    %42 = vector.broadcast %41 : vector<1x128xf32> to vector<128x128xf32>
    %43 = arith.mulf %40, %42 : vector<128x128xf32>
    %c0_21 = arith.constant 0 : index
    %c0_22 = arith.constant 0 : index
    %44 = vector.load %arg7[%c0_21, %c0_22] : memref<1x128xf32, #tpu.memory_space<vmem>>, vector<1x128xf32>
    %45 = vector.broadcast %44 : vector<1x128xf32> to vector<128x128xf32>
    %46 = arith.addf %43, %45 : vector<128x128xf32>
    %c0_23 = arith.constant 0 : index
    %c0_24 = arith.constant 0 : index
    %47 = vector.load %arg8[%c0_23, %c0_24] : memref<128x128xf32, #tpu.memory_space<vmem>>, vector<128x128xf32>
    tpu.vector_store %arg8[%c0_23, %c0_24], %46 {strides = array<i32>} : memref<128x128xf32, #tpu.memory_space<vmem>>, vector<128x128xf32>,
    return
  }
  func.func @transform_0(%arg0: i32) -> (i32, i32) {
    %c0_i32 = arith.constant 0 : i32
    %c0_i32_0 = arith.constant 0 : i32
    return %arg0, %c0_i32 : i32, i32
  }
  func.func @transform_1(%arg0: i32) -> (i32, i32) {
    %c0_i32 = arith.constant 0 : i32
    %c0_i32_0 = arith.constant 0 : i32
    %c0_i32_1 = arith.constant 0 : i32
    return %c0_i32, %c0_i32_0 : i32, i32
  }
  func.func @transform_2(%arg0: i32) -> (i32, i32) {
    %c0_i32 = arith.constant 0 : i32
    %c0_i32_0 = arith.constant 0 : i32
    %c0_i32_1 = arith.constant 0 : i32
    return %c0_i32, %c0_i32_0 : i32, i32
  }
  func.func @transform_3(%arg0: i32) -> (i32, i32) {
    %c0_i32 = arith.constant 0 : i32
    %c0_i32_0 = arith.constant 0 : i32
    %c0_i32_1 = arith.constant 0 : i32
    return %c0_i32, %c0_i32_0 : i32, i32
  }
  func.func @transform_4(%arg0: i32) -> (i32, i32) {
    %c0_i32 = arith.constant 0 : i32
    %c0_i32_0 = arith.constant 0 : i32
    %c0_i32_1 = arith.constant 0 : i32
    return %c0_i32, %c0_i32_0 : i32, i32
  }
  func.func @transform_5(%arg0: i32) -> (i32, i32) {
    %c0_i32 = arith.constant 0 : i32
    %c0_i32_0 = arith.constant 0 : i32
    %c0_i32_1 = arith.constant 0 : i32
    return %c0_i32, %c0_i32_0 : i32, i32
  }
  func.func @transform_6(%arg0: i32) -> (i32, i32) {
    %c0_i32 = arith.constant 0 : i32
    %c0_i32_0 = arith.constant 0 : i32
    %c0_i32_1 = arith.constant 0 : i32
    return %c0_i32, %c0_i32_0 : i32, i32
  }
  func.func @transform_7(%arg0: i32) -> (i32, i32) {
    %c0_i32 = arith.constant 0 : i32
    %c0_i32_0 = arith.constant 0 : i32
    return %arg0, %c0_i32 : i32, i32
  }
}

</mosaic_0001>

<llo_original>
// kernel: tpu_custom_call.1
$region0: #{tpu_custom_call.1}
  #allocation0 [shape = 'u32[]', space=smem, size = 0x4, offset = 0x4, fixed_abs, tag = 'smem constant byte address 0x4 - core index']
  #allocation1 [shape = 'u32[144,128]{1,0:T(1,128)}', space=vmem, size = 0x12000, scoped, tag = 'internal scratch']
  %s0 = inlined_call_operand.hbm [shape: f32[128,128], index: 0, kind: input, shape index: {}]
  %s1 = inlined_call_operand.hbm [shape: f32[128,256], index: 1, kind: input, shape index: {}]
  %s2 = inlined_call_operand.vmem [shape: f32[1,256], index: 2, kind: input, shape index: {}]
  %s3 = inlined_call_operand.hbm [shape: f32[256,128], index: 3, kind: input, shape index: {}]
  %s4 = inlined_call_operand.vmem [shape: f32[1,128], index: 4, kind: input, shape index: {}]
  %s5 = inlined_call_operand.vmem [shape: f32[1,128], index: 5, kind: input, shape index: {}]
  %s6 = inlined_call_operand.vmem [shape: f32[1,128], index: 6, kind: input, shape index: {}]
  %s7 = inlined_call_operand.hbm [shape: f32[128,128], index: 7, kind: output, shape index: {}]
  %s8 = sld [smem:[#allocation0]]
  $region50: #{tpu_custom_call.1} parent=0
    _
  %s10 = ssub.s32 1, %s8
  %s11 = scalar_select 0, %s10, %s8
  $region1: #{tpu_custom_call.1} parent=0
    #allocation2 [shape = 'u8[65536]{0}', space=vmem, size = 0x10000, scoped, tag = 'input window, operand 0, single buffered']
    #allocation3 [shape = 's32[1]{0}', space=sflag, size = 0x4, scoped, tag = 'scoped memory for tpu_custom_call.1']
    #allocation4 [shape = 's32[1]{0}', space=sflag, size = 0x4, scoped, tag = 'scoped memory for tpu_custom_call.1']
    #allocation5 [shape = 'u8[131072]{0}', space=vmem, size = 0x20000, scoped, tag = 'input window, operand 1, single buffered']
    #allocation6 [shape = 's32[1]{0}', space=sflag, size = 0x4, scoped, tag = 'scoped memory for tpu_custom_call.1']
    #allocation7 [shape = 'u8[131072]{0}', space=vmem, size = 0x20000, scoped, tag = 'input window, operand 3, single buffered']
    #allocation8 [shape = 'u8[65536]{0}', space=vmem, size = 0x10000, scoped, tag = 'output window, operand 0, single buffered']
    %12 = vsyncpa [#allocation3], 0
    %13 = vsyncpa [#allocation6], 0
    %14 = vsyncpa [#allocation4], 0
    // Predicated region
    $region2: #{tpu_custom_call.1} parent=1 // pred_check
      _
    $region3: #{tpu_custom_call.1} parent=1 // pred_check_branch
      %16 = sbr.rel (0) target = $region5
    $region4: #{tpu_custom_call.1} parent=1 // pred_region
      %s18 = ssub.s32 2048, 2048
      %19 = vsyncadd [#allocation3], %s18
      %s20 = sshll.u32 [#allocation2], 4
      %s21 = int_to_ptr.vmem [resolvable:$true] %s20
      %26 = dma.hbm_to_vmem [thread:$0]  %s0, 2048, %s21, [#allocation3], 128, 128, 8
    $region5: #{tpu_custom_call.1} parent=1 // pred_fallthru
      _
    // Predicated region
    $region6: #{tpu_custom_call.1} parent=1 // pred_check
      _
    $region7: #{tpu_custom_call.1} parent=1 // pred_check_branch
      %28 = sbr.rel (0) target = $region9
    $region8: #{tpu_custom_call.1} parent=1 // pred_region
      %s30 = ssub.s32 4096, 4096
      %31 = vsyncadd [#allocation6], %s30
      %s32 = sshll.u32 [#allocation5], 4
      %s33 = int_to_ptr.vmem [resolvable:$true] %s32
      %38 = dma.hbm_to_vmem [thread:$0]  %s1, 4096, %s33, [#allocation6], 256, 256, 16
    $region9: #{tpu_custom_call.1} parent=1 // pred_fallthru
      _
    // Predicated region
    $region10: #{tpu_custom_call.1} parent=1 // pred_check
      _
    $region11: #{tpu_custom_call.1} parent=1 // pred_check_branch
      %40 = sbr.rel (0) target = $region13
    $region12: #{tpu_custom_call.1} parent=1 // pred_region
      _
    $region13: #{tpu_custom_call.1} parent=1 // pred_fallthru
      _
    // Predicated region
    $region14: #{tpu_custom_call.1} parent=1 // pred_check
      _
    $region15: #{tpu_custom_call.1} parent=1 // pred_check_branch
      %42 = sbr.rel (0) target = $region17
    $region16: #{tpu_custom_call.1} parent=1 // pred_region
      %s44 = ssub.s32 4096, 4096
      %45 = vsyncadd [#allocation6], %s44
      %s46 = sshll.u32 [#allocation7], 4
      %s47 = int_to_ptr.vmem [resolvable:$true] %s46
      %52 = dma.hbm_to_vmem [thread:$0]  %s3, 4096, %s47, [#allocation6], 128, 128, 8
    $region17: #{tpu_custom_call.1} parent=1 // pred_fallthru
      _
    // Predicated region
    $region18: #{tpu_custom_call.1} parent=1 // pred_check
      _
    $region19: #{tpu_custom_call.1} parent=1 // pred_check_branch
      %54 = sbr.rel (0) target = $region21
    $region20: #{tpu_custom_call.1} parent=1 // pred_region
      _
    $region21: #{tpu_custom_call.1} parent=1 // pred_fallthru
      _
    // Predicated region
    $region22: #{tpu_custom_call.1} parent=1 // pred_check
      _
    $region23: #{tpu_custom_call.1} parent=1 // pred_check_branch
      %56 = sbr.rel (0) target = $region25
    $region24: #{tpu_custom_call.1} parent=1 // pred_region
      _
    $region25: #{tpu_custom_call.1} parent=1 // pred_fallthru
      _
    // Predicated region
    $region26: #{tpu_custom_call.1} parent=1 // pred_check
      _
    $region27: #{tpu_custom_call.1} parent=1 // pred_check_branch
      %58 = sbr.rel (0) target = $region29
    $region28: #{tpu_custom_call.1} parent=1 // pred_region
      _
    $region29: #{tpu_custom_call.1} parent=1 // pred_fallthru
      _
    // Predicated region
    $region30: #{tpu_custom_call.1} parent=1 // pred_check
      _
    $region31: #{tpu_custom_call.1} parent=1 // pred_check_branch
      %60 = sbr.rel (0) target = $region33
    $region32: #{tpu_custom_call.1} parent=1 // pred_region
      %61 = dma.done [#allocation3], 2048
    $region33: #{tpu_custom_call.1} parent=1 // pred_fallthru
      _
    // Predicated region
    $region34: #{tpu_custom_call.1} parent=1 // pred_check
      _
    $region35: #{tpu_custom_call.1} parent=1 // pred_check_branch
      %63 = sbr.rel (0) target = $region37
    $region36: #{tpu_custom_call.1} parent=1 // pred_region
      %64 = dma.done [#allocation6], 4096
    $region37: #{tpu_custom_call.1} parent=1 // pred_fallthru
      _
    // Predicated region
    $region38: #{tpu_custom_call.1} parent=1 // pred_check
      _
    $region39: #{tpu_custom_call.1} parent=1 // pred_check_branch
      %66 = sbr.rel (0) target = $region41
    $region40: #{tpu_custom_call.1} parent=1 // pred_region
      %67 = dma.done [#allocation6], 4096
    $region41: #{tpu_custom_call.1} parent=1 // pred_fallthru
      _
    %v68 = vld [vmem:[#allocation2] sm:$0xff]
    %v69 = vld [vmem:[#allocation2 + $0x8] sm:$0xff]
    %v70 = vld [vmem:[#allocation2 + $0x10] sm:$0xff]
    %v71 = vld [vmem:[#allocation2 + $0x18] sm:$0xff]
    %v72 = vld [vmem:[#allocation2 + $0x20] sm:$0xff]
    %v73 = vld [vmem:[#allocation2 + $0x28] sm:$0xff]
    %v74 = vld [vmem:[#allocation2 + $0x30] sm:$0xff]
    %v75 = vld [vmem:[#allocation2 + $0x38] sm:$0xff]
    %v76 = vld [vmem:[#allocation2 + $0x40] sm:$0xff]
    %v77 = vld [vmem:[#allocation2 + $0x48] sm:$0xff]
    %v78 = vld [vmem:[#allocation2 + $0x50] sm:$0xff]
    %v79 = vld [vmem:[#allocation2 + $0x58] sm:$0xff]
    %v80 = vld [vmem:[#allocation2 + $0x60] sm:$0xff]
    %v81 = vld [vmem:[#allocation2 + $0x68] sm:$0xff]
    %v82 = vld [vmem:[#allocation2 + $0x70] sm:$0xff]
    %v83 = vld [vmem:[#allocation2 + $0x78] sm:$0xff]
    %v84 = vld [vmem:[#allocation5] sm:$0xff]
    %v85 = vld [vmem:[#allocation5 + $0x8] sm:$0xff]
    %v86 = vld [vmem:[#allocation5 + $0x10] sm:$0xff]
    %v87 = vld [vmem:[#allocation5 + $0x18] sm:$0xff]
    %v88 = vld [vmem:[#allocation5 + $0x20] sm:$0xff]
    %v89 = vld [vmem:[#allocation5 + $0x28] sm:$0xff]
    %v90 = vld [vmem:[#allocation5 + $0x30] sm:$0xff]
    %v91 = vld [vmem:[#allocation5 + $0x38] sm:$0xff]
    %v92 = vld [vmem:[#allocation5 + $0x40] sm:$0xff]
    %v93 = vld [vmem:[#allocation5 + $0x48] sm:$0xff]
    %v94 = vld [vmem:[#allocation5 + $0x50] sm:$0xff]
    %v95 = vld [vmem:[#allocation5 + $0x58] sm:$0xff]
    %v96 = vld [vmem:[#allocation5 + $0x60] sm:$0xff]
    %v97 = vld [vmem:[#allocation5 + $0x68] sm:$0xff]
    %v98 = vld [vmem:[#allocation5 + $0x70] sm:$0xff]
    %v99 = vld [vmem:[#allocation5 + $0x78] sm:$0xff]
    %v100 = vld [vmem:[#allocation5 + $0x80] sm:$0xff]
    %v101 = vld [vmem:[#allocation5 + $0x88] sm:$0xff]
    %v102 = vld [vmem:[#allocation5 + $0x90] sm:$0xff]
    %v103 = vld [vmem:[#allocation5 + $0x98] sm:$0xff]
    %v104 = vld [vmem:[#allocation5 + $0xa0] sm:$0xff]
    %v105 = vld [vmem:[#allocation5 + $0xa8] sm:$0xff]
    %v106 = vld [vmem:[#allocation5 + $0xb0] sm:$0xff]
    %v107 = vld [vmem:[#allocation5 + $0xb8] sm:$0xff]
    %v108 = vld [vmem:[#allocation5 + $0xc0] sm:$0xff]
    %v109 = vld [vmem:[#allocation5 + $0xc8] sm:$0xff]
    %v110 = vld [vmem:[#allocation5 + $0xd0] sm:$0xff]
    %v111 = vld [vmem:[#allocation5 + $0xd8] sm:$0xff]
    %v112 = vld [vmem:[#allocation5 + $0xe0] sm:$0xff]
    %v113 = vld [vmem:[#allocation5 + $0xe8] sm:$0xff]
    %v114 = vld [vmem:[#allocation5 + $0xf0] sm:$0xff]
    %v115 = vld [vmem:[#allocation5 + $0xf8] sm:$0xff]
    %v116 = vld [vmem:[%s2] sm:$0x3]
    %v118 = vlaneseq
    %v119 = vshrl.u32 %v118, 7
    %v120 = vsub.s32 0, %v119
    %v121 = vrot.slane %v116, %v120
    %v122 = vlaneseq
    %v123 = vshrl.u32 %v122, 7
    %v124 = vsub.s32 1, %v123
    %v125 = vrot.slane %v116, %v124
    %128 = vmatprep.subr.mxu0 %v85
    %129 = vmatpush1.msra.mxu0 %v84
    %130 = vmatprep.subr.mxu0 %v87
    %131 = vmatpush1.msra.mxu0 %v86
    %132 = vmatprep.subr.mxu0 %v89
    %133 = vmatpush1.msra.mxu0 %v88
    %134 = vmatprep.subr.mxu0 %v91
    %135 = vmatpush1.msra.mxu0 %v90
    %136 = vmatprep.subr.mxu0 %v93
    %137 = vmatpush1.msra.mxu0 %v92
    %138 = vmatprep.subr.mxu0 %v95
    %139 = vmatpush1.msra.mxu0 %v94
    %140 = vmatprep.subr.mxu0 %v97
    %141 = vmatpush1.msra.mxu0 %v96
    %142 = vmatprep.subr.mxu0 %v99
    %143 = vmatpush1.msra.mxu0 %v98
    %144 = vmatprep.subr.mxu0 %v101
    %145 = vmatpush1.msra.mxu0 %v100
    %146 = vmatprep.subr.mxu0 %v103
    %147 = vmatpush1.msra.mxu0 %v102
    %148 = vmatprep.subr.mxu0 %v105
    %149 = vmatpush1.msra.mxu0 %v104
    %150 = vmatprep.subr.mxu0 %v107
    %151 = vmatpush1.msra.mxu0 %v106
    %152 = vmatprep.subr.mxu0 %v109
    %153 = vmatpush1.msra.mxu0 %v108
    %154 = vmatprep.subr.mxu0 %v111
    %155 = vmatpush1.msra.mxu0 %v110
    %156 = vmatprep.subr.mxu0 %v113
    %157 = vmatpush1.msra.mxu0 %v112
    %158 = vmatprep.subr.mxu0 %v115
    %159 = vmatpush1.msra.mxu0 %v114
    %160 = vmatprep.subr.mxu0 0.0
    %161 = vmatpush1.msra.mxu0 0.0
    %162 = vmatprep.subr.mxu0 0.0
    %163 = vmatpush1.msra.mxu0 0.0
    %164 = vmatprep.subr.mxu0 0.0
    %165 = vmatpush1.msra.mxu0 0.0
    %166 = vmatprep.subr.mxu0 0.0
    %167 = vmatpush1.msra.mxu0 0.0
    %168 = vmatprep.subr.mxu0 0.0
    %169 = vmatpush1.msra.mxu0 0.0
    %170 = vmatprep.subr.mxu0 0.0
    %171 = vmatpush1.msra.mxu0 0.0
    %172 = vmatprep.subr.mxu0 0.0
    %173 = vmatpush1.msra.mxu0 0.0
    %174 = vmatprep.subr.mxu0 0.0
    %175 = vmatpush1.msra.mxu0 0.0
    %176 = vmatprep.subr.mxu0 0.0
    %177 = vmatpush1.msra.mxu0 0.0
    %178 = vmatprep.subr.mxu0 0.0
    %179 = vmatpush1.msra.mxu0 0.0
    %180 = vmatprep.subr.mxu0 0.0
    %181 = vmatpush1.msra.mxu0 0.0
    %182 = vmatprep.subr.mxu0 0.0
    %183 = vmatpush1.msra.mxu0 0.0
    %184 = vmatprep.subr.mxu0 0.0
    %185 = vmatpush1.msra.mxu0 0.0
    %186 = vmatprep.subr.mxu0 0.0
    %187 = vmatpush1.msra.mxu0 0.0
    %188 = vmatprep.subr.mxu0 0.0
    %189 = vmatpush1.msra.mxu0 0.0
    %190 = vmatprep.subr.mxu0 0.0
    %191 = vmatpush1.msra.mxu0 0.0
    %192 = vmatprep.mubr.f32.mxu0 0.0
    %193 = vmatmul.mubr.f32.gmra.mrb[0].mxu0 %v68
    %v194 = vpop.f32.mrb[0].mxu0
    %v195 = vadd.f32 %v121, %v194
    %v196 = vpop.f32.mrb[0].mxu0
    %v197 = vadd.f32 %v125, %v196
    %198 = vmatprep.mubr.f32.mxu0 0.0
    %199 = vmatmul.mubr.f32.gmra.mrb[0].mxu0 %v69
    %v200 = vpop.f32.mrb[0].mxu0
    %v201 = vadd.f32 %v121, %v200
    %v202 = vpop.f32.mrb[0].mxu0
    %v203 = vadd.f32 %v125, %v202
    %204 = vmatprep.mubr.f32.mxu0 0.0
    %205 = vmatmul.mubr.f32.gmra.mrb[0].mxu0 %v70
    %v206 = vpop.f32.mrb[0].mxu0
    %v207 = vadd.f32 %v121, %v206
    %v208 = vpop.f32.mrb[0].mxu0
    %v209 = vadd.f32 %v125, %v208
    %210 = vmatprep.mubr.f32.mxu0 0.0
    %211 = vmatmul.mubr.f32.gmra.mrb[0].mxu0 %v71
    %v212 = vpop.f32.mrb[0].mxu0
    %v213 = vadd.f32 %v121, %v212
    %v214 = vpop.f32.mrb[0].mxu0
    %v215 = vadd.f32 %v125, %v214
    %216 = vmatprep.mubr.f32.mxu0 0.0
    %217 = vmatmul.mubr.f32.gmra.mrb[0].mxu0 %v72
    %v218 = vpop.f32.mrb[0].mxu0
    %v219 = vadd.f32 %v121, %v218
    %v220 = vpop.f32.mrb[0].mxu0
    %v221 = vadd.f32 %v125, %v220
    %222 = vmatprep.mubr.f32.mxu0 0.0
    %223 = vmatmul.mubr.f32.gmra.mrb[0].mxu0 %v73
    %v224 = vpop.f32.mrb[0].mxu0
    %v225 = vadd.f32 %v121, %v224
    %v226 = vpop.f32.mrb[0].mxu0
    %v227 = vadd.f32 %v125, %v226
    %228 = vmatprep.mubr.f32.mxu0 0.0
    %229 = vmatmul.mubr.f32.gmra.mrb[0].mxu0 %v74
    %v230 = vpop.f32.mrb[0].mxu0
    %v231 = vadd.f32 %v121, %v230
    %v232 = vpop.f32.mrb[0].mxu0
    %v233 = vadd.f32 %v125, %v232
    %234 = vmatprep.mubr.f32.mxu0 0.0
    %235 = vmatmul.mubr.f32.gmra.mrb[0].mxu0 %v75
    %v236 = vpop.f32.mrb[0].mxu0
    %v237 = vadd.f32 %v121, %v236
    %v238 = vpop.f32.mrb[0].mxu0
    %v239 = vadd.f32 %v125, %v238
    %240 = vmatprep.mubr.f32.mxu0 0.0
    %241 = vmatmul.mubr.f32.gmra.mrb[0].mxu0 %v76
    %v242 = vpop.f32.mrb[0].mxu0
    %v243 = vadd.f32 %v121, %v242
    %v244 = vpop.f32.mrb[0].mxu0
    %v245 = vadd.f32 %v125, %v244
    %246 = vmatprep.mubr.f32.mxu0 0.0
    %247 = vmatmul.mubr.f32.gmra.mrb[0].mxu0 %v77
    %v248 = vpop.f32.mrb[0].mxu0
    %v249 = vadd.f32 %v121, %v248
    %v250 = vpop.f32.mrb[0].mxu0
    %v251 = vadd.f32 %v125, %v250
    %252 = vmatprep.mubr.f32.mxu0 0.0
    %253 = vmatmul.mubr.f32.gmra.mrb[0].mxu0 %v78
    %v254 = vpop.f32.mrb[0].mxu0
    %v255 = vadd.f32 %v121, %v254
    %v256 = vpop.f32.mrb[0].mxu0
    %v257 = vadd.f32 %v125, %v256
    %258 = vmatprep.mubr.f32.mxu0 0.0
    %259 = vmatmul.mubr.f32.gmra.mrb[0].mxu0 %v79
    %v260 = vpop.f32.mrb[0].mxu0
    %v261 = vadd.f32 %v121, %v260
    %v262 = vpop.f32.mrb[0].mxu0
    %v263 = vadd.f32 %v125, %v262
    %264 = vmatprep.mubr.f32.mxu0 0.0
    %265 = vmatmul.mubr.f32.gmra.mrb[0].mxu0 %v80
    %v266 = vpop.f32.mrb[0].mxu0
    %v267 = vadd.f32 %v121, %v266
    %v268 = vpop.f32.mrb[0].mxu0
    %v269 = vadd.f32 %v125, %v268
    %270 = vmatprep.mubr.f32.mxu0 0.0
    %271 = vmatmul.mubr.f32.gmra.mrb[0].mxu0 %v81
    %v272 = vpop.f32.mrb[0].mxu0
    %v273 = vadd.f32 %v121, %v272
    %v274 = vpop.f32.mrb[0].mxu0
    %v275 = vadd.f32 %v125, %v274
    %276 = vmatprep.mubr.f32.mxu0 0.0
    %277 = vmatmul.mubr.f32.gmra.mrb[0].mxu0 %v82
    %v278 = vpop.f32.mrb[0].mxu0
    %v279 = vadd.f32 %v121, %v278
    %v280 = vpop.f32.mrb[0].mxu0
    %v281 = vadd.f32 %v125, %v280
    %282 = vmatprep.mubr.f32.mxu0 0.0
    %283 = vmatmul.mubr.f32.gmra.mrb[0].mxu0 %v83
    %v284 = vpop.f32.mrb[0].mxu0
    %v285 = vadd.f32 %v121, %v284
    %v286 = vpop.f32.mrb[0].mxu0
    %v287 = vadd.f32 %v125, %v286
    %288 = vdwg.mxu0
    %v289 = vmul.f32 %v195, 0.5
    %v290 = vmul.f32 %v197, 0.5
    %v291 = vmul.f32 %v201, 0.5
    %v292 = vmul.f32 %v203, 0.5
    %v293 = vmul.f32 %v207, 0.5
    %v294 = vmul.f32 %v209, 0.5
    %v295 = vmul.f32 %v213, 0.5
    %v296 = vmul.f32 %v215, 0.5
    %v297 = vmul.f32 %v219, 0.5
    %v298 = vmul.f32 %v221, 0.5
    %v299 = vmul.f32 %v225, 0.5
    %v300 = vmul.f32 %v227, 0.5
    %v301 = vmul.f32 %v231, 0.5
    %v302 = vmul.f32 %v233, 0.5
    %v303 = vmul.f32 %v237, 0.5
    %v304 = vmul.f32 %v239, 0.5
    %v305 = vmul.f32 %v243, 0.5
    %v306 = vmul.f32 %v245, 0.5
    %v307 = vmul.f32 %v249, 0.5
    %v308 = vmul.f32 %v251, 0.5
    %v309 = vmul.f32 %v255, 0.5
    %v310 = vmul.f32 %v257, 0.5
    %v311 = vmul.f32 %v261, 0.5
    %v312 = vmul.f32 %v263, 0.5
    %v313 = vmul.f32 %v267, 0.5
    %v314 = vmul.f32 %v269, 0.5
    %v315 = vmul.f32 %v273, 0.5
    %v316 = vmul.f32 %v275, 0.5
    %v317 = vmul.f32 %v279, 0.5
    %v318 = vmul.f32 %v281, 0.5
    %v319 = vmul.f32 %v285, 0.5
    %v320 = vmul.f32 %v287, 0.5
    %v321 = vmul.f32 %v195, 0.044715
    %v322 = vmul.f32 %v197, 0.044715
    %v323 = vmul.f32 %v201, 0.044715
    %v324 = vmul.f32 %v203, 0.044715
    %v325 = vmul.f32 %v207, 0.044715
    %v326 = vmul.f32 %v209, 0.044715
    %v327 = vmul.f32 %v213, 0.044715
    %v328 = vmul.f32 %v215, 0.044715
    %v329 = vmul.f32 %v219, 0.044715
    %v330 = vmul.f32 %v221, 0.044715
    %v331 = vmul.f32 %v225, 0.044715
    %v332 = vmul.f32 %v227, 0.044715
    %v333 = vmul.f32 %v231, 0.044715
    %v334 = vmul.f32 %v233, 0.044715
    %v335 = vmul.f32 %v237, 0.044715
    %v336 = vmul.f32 %v239, 0.044715
    %v337 = vmul.f32 %v243, 0.044715
    %v338 = vmul.f32 %v245, 0.044715
    %v339 = vmul.f32 %v249, 0.044715
    %v340 = vmul.f32 %v251, 0.044715
    %v341 = vmul.f32 %v255, 0.044715
    %v342 = vmul.f32 %v257, 0.044715
    %v343 = vmul.f32 %v261, 0.044715
    %v344 = vmul.f32 %v263, 0.044715
    %v345 = vmul.f32 %v267, 0.044715
    %v346 = vmul.f32 %v269, 0.044715
    %v347 = vmul.f32 %v273, 0.044715
    %v348 = vmul.f32 %v275, 0.044715
    %v349 = vmul.f32 %v279, 0.044715
    %v350 = vmul.f32 %v281, 0.044715
    %v351 = vmul.f32 %v285, 0.044715
    %v352 = vmul.f32 %v287, 0.044715
    %v353 = vmul.f32 %v321, %v195
    %v354 = vmul.f32 %v322, %v197
    %v355 = vmul.f32 %v323, %v201
    %v356 = vmul.f32 %v324, %v203
    %v357 = vmul.f32 %v325, %v207
    %v358 = vmul.f32 %v326, %v209
    %v359 = vmul.f32 %v327, %v213
    %v360 = vmul.f32 %v328, %v215
    %v361 = vmul.f32 %v329, %v219
    %v362 = vmul.f32 %v330, %v221
    %v363 = vmul.f32 %v331, %v225
    %v364 = vmul.f32 %v332, %v227
    %v365 = vmul.f32 %v333, %v231
    %v366 = vmul.f32 %v334, %v233
    %v367 = vmul.f32 %v335, %v237
    %v368 = vmul.f32 %v336, %v239
    %v369 = vmul.f32 %v337, %v243
    %v370 = vmul.f32 %v338, %v245
    %v371 = vmul.f32 %v339, %v249
    %v372 = vmul.f32 %v340, %v251
    %v373 = vmul.f32 %v341, %v255
    %v374 = vmul.f32 %v342, %v257
    %v375 = vmul.f32 %v343, %v261
    %v376 = vmul.f32 %v344, %v263
    %v377 = vmul.f32 %v345, %v267
    %v378 = vmul.f32 %v346, %v269
    %v379 = vmul.f32 %v347, %v273
    %v380 = vmul.f32 %v348, %v275
    %v381 = vmul.f32 %v349, %v279
    %v382 = vmul.f32 %v350, %v281
    %v383 = vmul.f32 %v351, %v285
    %v384 = vmul.f32 %v352, %v287
    %v385 = vmul.f32 %v353, %v195
    %v386 = vmul.f32 %v354, %v197
    %v387 = vmul.f32 %v355, %v201
    %v388 = vmul.f32 %v356, %v203
    %v389 = vmul.f32 %v357, %v207
    %v390 = vmul.f32 %v358, %v209
    %v391 = vmul.f32 %v359, %v213
    %v392 = vmul.f32 %v360, %v215
    %v393 = vmul.f32 %v361, %v219
    %v394 = vmul.f32 %v362, %v221
    %v395 = vmul.f32 %v363, %v225
    %v396 = vmul.f32 %v364, %v227
    %v397 = vmul.f32 %v365, %v231
    %v398 = vmul.f32 %v366, %v233
    %v399 = vmul.f32 %v367, %v237
    %v400 = vmul.f32 %v368, %v239
    %v401 = vmul.f32 %v369, %v243
    %v402 = vmul.f32 %v370, %v245
    %v403 = vmul.f32 %v371, %v249
    %v404 = vmul.f32 %v372, %v251
    %v405 = vmul.f32 %v373, %v255
    %v406 = vmul.f32 %v374, %v257
    %v407 = vmul.f32 %v375, %v261
    %v408 = vmul.f32 %v376, %v263
    %v409 = vmul.f32 %v377, %v267
    %v410 = vmul.f32 %v378, %v269
    %v411 = vmul.f32 %v379, %v273
    %v412 = vmul.f32 %v380, %v275
    %v413 = vmul.f32 %v381, %v279
    %v414 = vmul.f32 %v382, %v281
    %v415 = vmul.f32 %v383, %v285
    %v416 = vmul.f32 %v384, %v287
    %v417 = vadd.f32 %v195, %v385
    %v418 = vadd.f32 %v197, %v386
    %v419 = vadd.f32 %v201, %v387
    %v420 = vadd.f32 %v203, %v388
    %v421 = vadd.f32 %v207, %v389
    %v422 = vadd.f32 %v209, %v390
    %v423 = vadd.f32 %v213, %v391
    %v424 = vadd.f32 %v215, %v392
    %v425 = vadd.f32 %v219, %v393
    %v426 = vadd.f32 %v221, %v394
    %v427 = vadd.f32 %v225, %v395
    %v428 = vadd.f32 %v227, %v396
    %v429 = vadd.f32 %v231, %v397
    %v430 = vadd.f32 %v233, %v398
    %v431 = vadd.f32 %v237, %v399
    %v432 = vadd.f32 %v239, %v400
    %v433 = vadd.f32 %v243, %v401
    %v434 = vadd.f32 %v245, %v402
    %v435 = vadd.f32 %v249, %v403
    %v436 = vadd.f32 %v251, %v404
    %v437 = vadd.f32 %v255, %v405
    %v438 = vadd.f32 %v257, %v406
    %v439 = vadd.f32 %v261, %v407
    %v440 = vadd.f32 %v263, %v408
    %v441 = vadd.f32 %v267, %v409
    %v442 = vadd.f32 %v269, %v410
    %v443 = vadd.f32 %v273, %v411
    %v444 = vadd.f32 %v275, %v412
    %v445 = vadd.f32 %v279, %v413
    %v446 = vadd.f32 %v281, %v414
    %v447 = vadd.f32 %v285, %v415
    %v448 = vadd.f32 %v287, %v416
    %v449 = vmul.f32 %v417, 0.7978846
    %v450 = vmul.f32 %v418, 0.7978846
    %v451 = vmul.f32 %v419, 0.7978846
    %v452 = vmul.f32 %v420, 0.7978846
    %v453 = vmul.f32 %v421, 0.7978846
    %v454 = vmul.f32 %v422, 0.7978846
    %v455 = vmul.f32 %v423, 0.7978846
    %v456 = vmul.f32 %v424, 0.7978846
    %v457 = vmul.f32 %v425, 0.7978846
    %v458 = vmul.f32 %v426, 0.7978846
    %v459 = vmul.f32 %v427, 0.7978846
    %v460 = vmul.f32 %v428, 0.7978846
    %v461 = vmul.f32 %v429, 0.7978846
    %v462 = vmul.f32 %v430, 0.7978846
    %v463 = vmul.f32 %v431, 0.7978846
    %v464 = vmul.f32 %v432, 0.7978846
    %v465 = vmul.f32 %v433, 0.7978846
    %v466 = vmul.f32 %v434, 0.7978846
    %v467 = vmul.f32 %v435, 0.7978846
    %v468 = vmul.f32 %v436, 0.7978846
    %v469 = vmul.f32 %v437, 0.7978846
    %v470 = vmul.f32 %v438, 0.7978846
    %v471 = vmul.f32 %v439, 0.7978846
    %v472 = vmul.f32 %v440, 0.7978846
    %v473 = vmul.f32 %v441, 0.7978846
    %v474 = vmul.f32 %v442, 0.7978846
    %v475 = vmul.f32 %v443, 0.7978846
    %v476 = vmul.f32 %v444, 0.7978846
    %v477 = vmul.f32 %v445, 0.7978846
    %v478 = vmul.f32 %v446, 0.7978846
    %v479 = vmul.f32 %v447, 0.7978846
    %v480 = vmul.f32 %v448, 0.7978846
    %v481 = vtanh.pop %v449
    %v482 = vtanh.pop %v450
    %v483 = vtanh.pop %v451
    %v484 = vtanh.pop %v452
    %v485 = vtanh.pop %v453
    %v486 = vtanh.pop %v454
    %v487 = vtanh.pop %v455
    %v488 = vtanh.pop %v456
    %v489 = vtanh.pop %v457
    %v490 = vtanh.pop %v458
    %v491 = vtanh.pop %v459
    %v492 = vtanh.pop %v460
    %v493 = vtanh.pop %v461
    %v494 = vtanh.pop %v462
    %v495 = vtanh.pop %v463
    %v496 = vtanh.pop %v464
    %v497 = vtanh.pop %v465
    %v498 = vtanh.pop %v466
    %v499 = vtanh.pop %v467
    %v500 = vtanh.pop %v468
    %v501 = vtanh.pop %v469
    %v502 = vtanh.pop %v470
    %v503 = vtanh.pop %v471
    %v504 = vtanh.pop %v472
    %v505 = vtanh.pop %v473
    %v506 = vtanh.pop %v474
    %v507 = vtanh.pop %v475
    %v508 = vtanh.pop %v476
    %v509 = vtanh.pop %v477
    %v510 = vtanh.pop %v478
    %v511 = vtanh.pop %v479
    %v512 = vtanh.pop %v480
    %v513 = vadd.f32 %v481, 1.0
    %v514 = vadd.f32 %v482, 1.0
    %v515 = vadd.f32 %v483, 1.0
    %v516 = vadd.f32 %v484, 1.0
    %v517 = vadd.f32 %v485, 1.0
    %v518 = vadd.f32 %v486, 1.0
    %v519 = vadd.f32 %v487, 1.0
    %v520 = vadd.f32 %v488, 1.0
    %v521 = vadd.f32 %v489, 1.0
    %v522 = vadd.f32 %v490, 1.0
    %v523 = vadd.f32 %v491, 1.0
    %v524 = vadd.f32 %v492, 1.0
    %v525 = vadd.f32 %v493, 1.0
    %v526 = vadd.f32 %v494, 1.0
    %v527 = vadd.f32 %v495, 1.0
    %v528 = vadd.f32 %v496, 1.0
    %v529 = vadd.f32 %v497, 1.0
    %v530 = vadd.f32 %v498, 1.0
    %v531 = vadd.f32 %v499, 1.0
    %v532 = vadd.f32 %v500, 1.0
    %v533 = vadd.f32 %v501, 1.0
    %v534 = vadd.f32 %v502, 1.0
    %v535 = vadd.f32 %v503, 1.0
    %v536 = vadd.f32 %v504, 1.0
    %v537 = vadd.f32 %v505, 1.0
    %v538 = vadd.f32 %v506, 1.0
    %v539 = vadd.f32 %v507, 1.0
    %v540 = vadd.f32 %v508, 1.0
    %v541 = vadd.f32 %v509, 1.0
    %v542 = vadd.f32 %v510, 1.0
    %v543 = vadd.f32 %v511, 1.0
    %v544 = vadd.f32 %v512, 1.0
    %v545 = vmul.f32 %v289, %v513
    %v546 = vmul.f32 %v290, %v514
    %v547 = vmul.f32 %v291, %v515
    %v548 = vmul.f32 %v292, %v516
    %v549 = vmul.f32 %v293, %v517
    %v550 = vmul.f32 %v294, %v518
    %v551 = vmul.f32 %v295, %v519
    %v552 = vmul.f32 %v296, %v520
    %v553 = vmul.f32 %v297, %v521
    %v554 = vmul.f32 %v298, %v522
    %v555 = vmul.f32 %v299, %v523
    %v556 = vmul.f32 %v300, %v524
    %v557 = vmul.f32 %v301, %v525
    %v558 = vmul.f32 %v302, %v526
    %v559 = vmul.f32 %v303, %v527
    %v560 = vmul.f32 %v304, %v528
    %v561 = vmul.f32 %v305, %v529
    %v562 = vmul.f32 %v306, %v530
    %v563 = vmul.f32 %v307, %v531
    %v564 = vmul.f32 %v308, %v532
    %v565 = vmul.f32 %v309, %v533
    %v566 = vmul.f32 %v310, %v534
    %v567 = vmul.f32 %v311, %v535
    %v568 = vmul.f32 %v312, %v536
    %v569 = vmul.f32 %v313, %v537
    %v570 = vmul.f32 %v314, %v538
    %v571 = vmul.f32 %v315, %v539
    %v572 = vmul.f32 %v316, %v540
    %v573 = vmul.f32 %v317, %v541
    %v574 = vmul.f32 %v318, %v542
    %v575 = vmul.f32 %v319, %v543
    %v576 = vmul.f32 %v320, %v544
    %v577 = vld [vmem:[#allocation7] sm:$0xff]
    %v578 = vld [vmem:[#allocation7 + $0x8] sm:$0xff]
    %v579 = vld [vmem:[#allocation7 + $0x10] sm:$0xff]
    %v580 = vld [vmem:[#allocation7 + $0x18] sm:$0xff]
    %v581 = vld [vmem:[#allocation7 + $0x20] sm:$0xff]
    %v582 = vld [vmem:[#allocation7 + $0x28] sm:$0xff]
    %v583 = vld [vmem:[#allocation7 + $0x30] sm:$0xff]
    %v584 = vld [vmem:[#allocation7 + $0x38] sm:$0xff]
    %v585 = vld [vmem:[#allocation7 + $0x40] sm:$0xff]
    %v586 = vld [vmem:[#allocation7 + $0x48] sm:$0xff]
    %v587 = vld [vmem:[#allocation7 + $0x50] sm:$0xff]
    %v588 = vld [vmem:[#allocation7 + $0x58] sm:$0xff]
    %v589 = vld [vmem:[#allocation7 + $0x60] sm:$0xff]
    %v590 = vld [vmem:[#allocation7 + $0x68] sm:$0xff]
    %v591 = vld [vmem:[#allocation7 + $0x70] sm:$0xff]
    %v592 = vld [vmem:[#allocation7 + $0x78] sm:$0xff]
    %v593 = vld [vmem:[#allocation7 + $0x80] sm:$0xff]
    %v594 = vld [vmem:[#allocation7 + $0x88] sm:$0xff]
    %v595 = vld [vmem:[#allocation7 + $0x90] sm:$0xff]
    %v596 = vld [vmem:[#allocation7 + $0x98] sm:$0xff]
    %v597 = vld [vmem:[#allocation7 + $0xa0] sm:$0xff]
    %v598 = vld [vmem:[#allocation7 + $0xa8] sm:$0xff]
    %v599 = vld [vmem:[#allocation7 + $0xb0] sm:$0xff]
    %v600 = vld [vmem:[#allocation7 + $0xb8] sm:$0xff]
    %v601 = vld [vmem:[#allocation7 + $0xc0] sm:$0xff]
    %v602 = vld [vmem:[#allocation7 + $0xc8] sm:$0xff]
    %v603 = vld [vmem:[#allocation7 + $0xd0] sm:$0xff]
    %v604 = vld [vmem:[#allocation7 + $0xd8] sm:$0xff]
    %v605 = vld [vmem:[#allocation7 + $0xe0] sm:$0xff]
    %v606 = vld [vmem:[#allocation7 + $0xe8] sm:$0xff]
    %v607 = vld [vmem:[#allocation7 + $0xf0] sm:$0xff]
    %v608 = vld [vmem:[#allocation7 + $0xf8] sm:$0xff]
    %v609 = vld [vmem:[%s4] sm:$0x1]
    %v611 = vlaneseq
    %v612 = vshrl.u32 %v611, 7
    %v613 = vsub.s32 0, %v612
    %v614 = vrot.slane %v609, %v613
    %616 = vmatprep.subr.mxu0 0.0
    %617 = vmatpush1.msra.mxu0 %v577
    %618 = vmatprep.subr.mxu0 0.0
    %619 = vmatpush1.msra.mxu0 %v578
    %620 = vmatprep.subr.mxu0 0.0
    %621 = vmatpush1.msra.mxu0 %v579
    %622 = vmatprep.subr.mxu0 0.0
    %623 = vmatpush1.msra.mxu0 %v580
    %624 = vmatprep.subr.mxu0 0.0
    %625 = vmatpush1.msra.mxu0 %v581
    %626 = vmatprep.subr.mxu0 0.0
    %627 = vmatpush1.msra.mxu0 %v582
    %628 = vmatprep.subr.mxu0 0.0
    %629 = vmatpush1.msra.mxu0 %v583
    %630 = vmatprep.subr.mxu0 0.0
    %631 = vmatpush1.msra.mxu0 %v584
    %632 = vmatprep.subr.mxu0 0.0
    %633 = vmatpush1.msra.mxu0 %v585
    %634 = vmatprep.subr.mxu0 0.0
    %635 = vmatpush1.msra.mxu0 %v586
    %636 = vmatprep.subr.mxu0 0.0
    %637 = vmatpush1.msra.mxu0 %v587
    %638 = vmatprep.subr.mxu0 0.0
    %639 = vmatpush1.msra.mxu0 %v588
    %640 = vmatprep.subr.mxu0 0.0
    %641 = vmatpush1.msra.mxu0 %v589
    %642 = vmatprep.subr.mxu0 0.0
    %643 = vmatpush1.msra.mxu0 %v590
    %644 = vmatprep.subr.mxu0 0.0
    %645 = vmatpush1.msra.mxu0 %v591
    %646 = vmatprep.subr.mxu0 0.0
    %647 = vmatpush1.msra.mxu0 %v592
    %648 = vmatprep.subr.mxu0 0.0
    %649 = vmatpush1.msra.mxu0 %v593
    %650 = vmatprep.subr.mxu0 0.0
    %651 = vmatpush1.msra.mxu0 %v594
    %652 = vmatprep.subr.mxu0 0.0
    %653 = vmatpush1.msra.mxu0 %v595
    %654 = vmatprep.subr.mxu0 0.0
    %655 = vmatpush1.msra.mxu0 %v596
    %656 = vmatprep.subr.mxu0 0.0
    %657 = vmatpush1.msra.mxu0 %v597
    %658 = vmatprep.subr.mxu0 0.0
    %659 = vmatpush1.msra.mxu0 %v598
    %660 = vmatprep.subr.mxu0 0.0
    %661 = vmatpush1.msra.mxu0 %v599
    %662 = vmatprep.subr.mxu0 0.0
    %663 = vmatpush1.msra.mxu0 %v600
    %664 = vmatprep.subr.mxu0 0.0
    %665 = vmatpush1.msra.mxu0 %v601
    %666 = vmatprep.subr.mxu0 0.0
    %667 = vmatpush1.msra.mxu0 %v602
    %668 = vmatprep.subr.mxu0 0.0
    %669 = vmatpush1.msra.mxu0 %v603
    %670 = vmatprep.subr.mxu0 0.0
    %671 = vmatpush1.msra.mxu0 %v604
    %672 = vmatprep.subr.mxu0 0.0
    %673 = vmatpush1.msra.mxu0 %v605
    %674 = vmatprep.subr.mxu0 0.0
    %675 = vmatpush1.msra.mxu0 %v606
    %676 = vmatprep.subr.mxu0 0.0
    %677 = vmatpush1.msra.mxu0 %v607
    %678 = vmatprep.subr.mxu0 0.0
    %679 = vmatpush1.msra.mxu0 %v608
    %680 = vmatprep.mubr.f32.mxu0 %v546
    %681 = vmatmul.mubr.f32.gmra.mrb[0].mxu0 %v545
    %v682 = vpop.f32.mrb[0].mxu0
    %v683 = vadd.f32 %v614, %v682
    %v684 = vpop.f32.mrb[0].mxu0
    %685 = vmatprep.mubr.f32.mxu0 %v548
    %686 = vmatmul.mubr.f32.gmra.mrb[0].mxu0 %v547
    %v687 = vpop.f32.mrb[0].mxu0
    %v688 = vadd.f32 %v614, %v687
    %v689 = vpop.f32.mrb[0].mxu0
    %690 = vmatprep.mubr.f32.mxu0 %v550
    %691 = vmatmul.mubr.f32.gmra.mrb[0].mxu0 %v549
    %v692 = vpop.f32.mrb[0].mxu0
    %v693 = vadd.f32 %v614, %v692
    %v694 = vpop.f32.mrb[0].mxu0
    %695 = vmatprep.mubr.f32.mxu0 %v552
    %696 = vmatmul.mubr.f32.gmra.mrb[0].mxu0 %v551
    %v697 = vpop.f32.mrb[0].mxu0
    %v698 = vadd.f32 %v614, %v697
    %v699 = vpop.f32.mrb[0].mxu0
    %700 = vmatprep.mubr.f32.mxu0 %v554
    %701 = vmatmul.mubr.f32.gmra.mrb[0].mxu0 %v553
    %v702 = vpop.f32.mrb[0].mxu0
    %v703 = vadd.f32 %v614, %v702
    %v704 = vpop.f32.mrb[0].mxu0
    %705 = vmatprep.mubr.f32.mxu0 %v556
    %706 = vmatmul.mubr.f32.gmra.mrb[0].mxu0 %v555
    %v707 = vpop.f32.mrb[0].mxu0
    %v708 = vadd.f32 %v614, %v707
    %v709 = vpop.f32.mrb[0].mxu0
    %710 = vmatprep.mubr.f32.mxu0 %v558
    %711 = vmatmul.mubr.f32.gmra.mrb[0].mxu0 %v557
    %v712 = vpop.f32.mrb[0].mxu0
    %v713 = vadd.f32 %v614, %v712
    %v714 = vpop.f32.mrb[0].mxu0
    %715 = vmatprep.mubr.f32.mxu0 %v560
    %716 = vmatmul.mubr.f32.gmra.mrb[0].mxu0 %v559
    %v717 = vpop.f32.mrb[0].mxu0
    %v718 = vadd.f32 %v614, %v717
    %v719 = vpop.f32.mrb[0].mxu0
    %720 = vmatprep.mubr.f32.mxu0 %v562
    %721 = vmatmul.mubr.f32.gmra.mrb[0].mxu0 %v561
    %v722 = vpop.f32.mrb[0].mxu0
    %v723 = vadd.f32 %v614, %v722
    %v724 = vpop.f32.mrb[0].mxu0
    %725 = vmatprep.mubr.f32.mxu0 %v564
    %726 = vmatmul.mubr.f32.gmra.mrb[0].mxu0 %v563
    %v727 = vpop.f32.mrb[0].mxu0
    %v728 = vadd.f32 %v614, %v727
    %v729 = vpop.f32.mrb[0].mxu0
    %730 = vmatprep.mubr.f32.mxu0 %v566
    %731 = vmatmul.mubr.f32.gmra.mrb[0].mxu0 %v565
    %v732 = vpop.f32.mrb[0].mxu0
    %v733 = vadd.f32 %v614, %v732
    %v734 = vpop.f32.mrb[0].mxu0
    %735 = vmatprep.mubr.f32.mxu0 %v568
    %736 = vmatmul.mubr.f32.gmra.mrb[0].mxu0 %v567
    %v737 = vpop.f32.mrb[0].mxu0
    %v738 = vadd.f32 %v614, %v737
    %v739 = vpop.f32.mrb[0].mxu0
    %740 = vmatprep.mubr.f32.mxu0 %v570
    %741 = vmatmul.mubr.f32.gmra.mrb[0].mxu0 %v569
    %v742 = vpop.f32.mrb[0].mxu0
    %v743 = vadd.f32 %v614, %v742
    %v744 = vpop.f32.mrb[0].mxu0
    %745 = vmatprep.mubr.f32.mxu0 %v572
    %746 = vmatmul.mubr.f32.gmra.mrb[0].mxu0 %v571
    %v747 = vpop.f32.mrb[0].mxu0
    %v748 = vadd.f32 %v614, %v747
    %v749 = vpop.f32.mrb[0].mxu0
    %750 = vmatprep.mubr.f32.mxu0 %v574
    %751 = vmatmul.mubr.f32.gmra.mrb[0].mxu0 %v573
    %v752 = vpop.f32.mrb[0].mxu0
    %v753 = vadd.f32 %v614, %v752
    %v754 = vpop.f32.mrb[0].mxu0
    %755 = vmatprep.mubr.f32.mxu0 %v576
    %756 = vmatmul.mubr.f32.gmra.mrb[0].mxu0 %v575
    %v757 = vpop.f32.mrb[0].mxu0
    %v758 = vadd.f32 %v614, %v757
    %v759 = vpop.f32.mrb[0].mxu0
    %760 = vdwg.mxu0
    %v761 = vadd.f32 %v683, %v68
    %v762 = vadd.f32 %v688, %v69
    %v763 = vadd.f32 %v693, %v70
    %v764 = vadd.f32 %v698, %v71
    %v765 = vadd.f32 %v703, %v72
    %v766 = vadd.f32 %v708, %v73
    %v767 = vadd.f32 %v713, %v74
    %v768 = vadd.f32 %v718, %v75
    %v769 = vadd.f32 %v723, %v76
    %v770 = vadd.f32 %v728, %v77
    %v771 = vadd.f32 %v733, %v78
    %v772 = vadd.f32 %v738, %v79
    %v773 = vadd.f32 %v743, %v80
    %v774 = vadd.f32 %v748, %v81
    %v775 = vadd.f32 %v753, %v82
    %v776 = vadd.f32 %v758, %v83
    %777 = vadd.xlane.f32.xlu0 %v761
    %v778 = vpop.xlane.xlu0 %777
    %779 = vadd.xlane.f32.xlu0 %v762
    %v780 = vpop.xlane.xlu0 %779
    %781 = vadd.xlane.f32.xlu0 %v763
    %v782 = vpop.xlane.xlu0 %781
    %783 = vadd.xlane.f32.xlu0 %v764
    %v784 = vpop.xlane.xlu0 %783
    %785 = vadd.xlane.f32.xlu0 %v765
    %v786 = vpop.xlane.xlu0 %785
    %787 = vadd.xlane.f32.xlu0 %v766
    %v788 = vpop.xlane.xlu0 %787
    %789 = vadd.xlane.f32.xlu0 %v767
    %v790 = vpop.xlane.xlu0 %789
    %791 = vadd.xlane.f32.xlu0 %v768
    %v792 = vpop.xlane.xlu0 %791
    %793 = vadd.xlane.f32.xlu0 %v769
    %v794 = vpop.xlane.xlu0 %793
    %795 = vadd.xlane.f32.xlu0 %v770
    %v796 = vpop.xlane.xlu0 %795
    %797 = vadd.xlane.f32.xlu0 %v771
    %v798 = vpop.xlane.xlu0 %797
    %799 = vadd.xlane.f32.xlu0 %v772
    %v800 = vpop.xlane.xlu0 %799
    %801 = vadd.xlane.f32.xlu0 %v773
    %v802 = vpop.xlane.xlu0 %801
    %803 = vadd.xlane.f32.xlu0 %v774
    %v804 = vpop.xlane.xlu0 %803
    %805 = vadd.xlane.f32.xlu0 %v775
    %v806 = vpop.xlane.xlu0 %805
    %807 = vadd.xlane.f32.xlu0 %v776
    %v808 = vpop.xlane.xlu0 %807
    %v809 = vrcp.pop 128.0
    %v810 = vmul.f32 %v778, %v809
    %v811 = vmul.f32 %v780, %v809
    %v812 = vmul.f32 %v782, %v809
    %v813 = vmul.f32 %v784, %v809
    %v814 = vmul.f32 %v786, %v809
    %v815 = vmul.f32 %v788, %v809
    %v816 = vmul.f32 %v790, %v809
    %v817 = vmul.f32 %v792, %v809
    %v818 = vmul.f32 %v794, %v809
    %v819 = vmul.f32 %v796, %v809
    %v820 = vmul.f32 %v798, %v809
    %v821 = vmul.f32 %v800, %v809
    %v822 = vmul.f32 %v802, %v809
    %v823 = vmul.f32 %v804, %v809
    %v824 = vmul.f32 %v806, %v809
    %v825 = vmul.f32 %v808, %v809
    %v826 = vsub.f32 %v761, %v810
    %v827 = vsub.f32 %v762, %v811
    %v828 = vsub.f32 %v763, %v812
    %v829 = vsub.f32 %v764, %v813
    %v830 = vsub.f32 %v765, %v814
    %v831 = vsub.f32 %v766, %v815
    %v832 = vsub.f32 %v767, %v816
    %v833 = vsub.f32 %v768, %v817
    %v834 = vsub.f32 %v769, %v818
    %v835 = vsub.f32 %v770, %v819
    %v836 = vsub.f32 %v771, %v820
    %v837 = vsub.f32 %v772, %v821
    %v838 = vsub.f32 %v773, %v822
    %v839 = vsub.f32 %v774, %v823
    %v840 = vsub.f32 %v775, %v824
    %v841 = vsub.f32 %v776, %v825
    %v842 = vmul.f32 %v826, %v826
    %v843 = vmul.f32 %v827, %v827
    %v844 = vmul.f32 %v828, %v828
    %v845 = vmul.f32 %v829, %v829
    %v846 = vmul.f32 %v830, %v830
    %v847 = vmul.f32 %v831, %v831
    %v848 = vmul.f32 %v832, %v832
    %v849 = vmul.f32 %v833, %v833
    %v850 = vmul.f32 %v834, %v834
    %v851 = vmul.f32 %v835, %v835
    %v852 = vmul.f32 %v836, %v836
    %v853 = vmul.f32 %v837, %v837
    %v854 = vmul.f32 %v838, %v838
    %v855 = vmul.f32 %v839, %v839
    %v856 = vmul.f32 %v840, %v840
    %v857 = vmul.f32 %v841, %v841
    %858 = vadd.xlane.f32.xlu0 %v842
    %v859 = vpop.xlane.xlu0 %858
    %860 = vadd.xlane.f32.xlu0 %v843
    %v861 = vpop.xlane.xlu0 %860
    %862 = vadd.xlane.f32.xlu0 %v844
    %v863 = vpop.xlane.xlu0 %862
    %864 = vadd.xlane.f32.xlu0 %v845
    %v865 = vpop.xlane.xlu0 %864
    %866 = vadd.xlane.f32.xlu0 %v846
    %v867 = vpop.xlane.xlu0 %866
    %868 = vadd.xlane.f32.xlu0 %v847
    %v869 = vpop.xlane.xlu0 %868
    %870 = vadd.xlane.f32.xlu0 %v848
    %v871 = vpop.xlane.xlu0 %870
    %872 = vadd.xlane.f32.xlu0 %v849
    %v873 = vpop.xlane.xlu0 %872
    %874 = vadd.xlane.f32.xlu0 %v850
    %v875 = vpop.xlane.xlu0 %874
    %876 = vadd.xlane.f32.xlu0 %v851
    %v877 = vpop.xlane.xlu0 %876
    %878 = vadd.xlane.f32.xlu0 %v852
    %v879 = vpop.xlane.xlu0 %878
    %880 = vadd.xlane.f32.xlu0 %v853
    %v881 = vpop.xlane.xlu0 %880
    %882 = vadd.xlane.f32.xlu0 %v854
    %v883 = vpop.xlane.xlu0 %882
    %884 = vadd.xlane.f32.xlu0 %v855
    %v885 = vpop.xlane.xlu0 %884
    %886 = vadd.xlane.f32.xlu0 %v856
    %v887 = vpop.xlane.xlu0 %886
    %888 = vadd.xlane.f32.xlu0 %v857
    %v889 = vpop.xlane.xlu0 %888
    %v890 = vmul.f32 %v859, %v809
    %v891 = vmul.f32 %v861, %v809
    %v892 = vmul.f32 %v863, %v809
    %v893 = vmul.f32 %v865, %v809
    %v894 = vmul.f32 %v867, %v809
    %v895 = vmul.f32 %v869, %v809
    %v896 = vmul.f32 %v871, %v809
    %v897 = vmul.f32 %v873, %v809
    %v898 = vmul.f32 %v875, %v809
    %v899 = vmul.f32 %v877, %v809
    %v900 = vmul.f32 %v879, %v809
    %v901 = vmul.f32 %v881, %v809
    %v902 = vmul.f32 %v883, %v809
    %v903 = vmul.f32 %v885, %v809
    %v904 = vmul.f32 %v887, %v809
    %v905 = vmul.f32 %v889, %v809
    %v906 = vadd.f32 %v890, 1e-06
    %v907 = vadd.f32 %v891, 1e-06
    %v908 = vadd.f32 %v892, 1e-06
    %v909 = vadd.f32 %v893, 1e-06
    %v910 = vadd.f32 %v894, 1e-06
    %v911 = vadd.f32 %v895, 1e-06
    %v912 = vadd.f32 %v896, 1e-06
    %v913 = vadd.f32 %v897, 1e-06
    %v914 = vadd.f32 %v898, 1e-06
    %v915 = vadd.f32 %v899, 1e-06
    %v916 = vadd.f32 %v900, 1e-06
    %v917 = vadd.f32 %v901, 1e-06
    %v918 = vadd.f32 %v902, 1e-06
    %v919 = vadd.f32 %v903, 1e-06
    %v920 = vadd.f32 %v904, 1e-06
    %v921 = vadd.f32 %v905, 1e-06
    %v922 = vrsqrt.pop %v906
    %v923 = vrsqrt.pop %v907
    %v924 = vrsqrt.pop %v908
    %v925 = vrsqrt.pop %v909
    %v926 = vrsqrt.pop %v910
    %v927 = vrsqrt.pop %v911
    %v928 = vrsqrt.pop %v912
    %v929 = vrsqrt.pop %v913
    %v930 = vrsqrt.pop %v914
    %v931 = vrsqrt.pop %v915
    %v932 = vrsqrt.pop %v916
    %v933 = vrsqrt.pop %v917
    %v934 = vrsqrt.pop %v918
    %v935 = vrsqrt.pop %v919
    %v936 = vrsqrt.pop %v920
    %v937 = vrsqrt.pop %v921
    %v938 = vmul.f32 %v826, %v922
    %v939 = vmul.f32 %v827, %v923
    %v940 = vmul.f32 %v828, %v924
    %v941 = vmul.f32 %v829, %v925
    %v942 = vmul.f32 %v830, %v926
    %v943 = vmul.f32 %v831, %v927
    %v944 = vmul.f32 %v832, %v928
    %v945 = vmul.f32 %v833, %v929
    %v946 = vmul.f32 %v834, %v930
    %v947 = vmul.f32 %v835, %v931
    %v948 = vmul.f32 %v836, %v932
    %v949 = vmul.f32 %v837, %v933
    %v950 = vmul.f32 %v838, %v934
    %v951 = vmul.f32 %v839, %v935
    %v952 = vmul.f32 %v840, %v936
    %v953 = vmul.f32 %v841, %v937
    %v954 = vld [vmem:[%s5] sm:$0x1]
    %v956 = vlaneseq
    %v957 = vshrl.u32 %v956, 7
    %v958 = vsub.s32 0, %v957
    %v959 = vrot.slane %v954, %v958
    %v961 = vmul.f32 %v938, %v959
    %v962 = vmul.f32 %v939, %v959
    %v963 = vmul.f32 %v940, %v959
    %v964 = vmul.f32 %v941, %v959
    %v965 = vmul.f32 %v942, %v959
    %v966 = vmul.f32 %v943, %v959
    %v967 = vmul.f32 %v944, %v959
    %v968 = vmul.f32 %v945, %v959
    %v969 = vmul.f32 %v946, %v959
    %v970 = vmul.f32 %v947, %v959
    %v971 = vmul.f32 %v948, %v959
    %v972 = vmul.f32 %v949, %v959
    %v973 = vmul.f32 %v950, %v959
    %v974 = vmul.f32 %v951, %v959
    %v975 = vmul.f32 %v952, %v959
    %v976 = vmul.f32 %v953, %v959
    %v977 = vld [vmem:[%s6] sm:$0x1]
    %v979 = vlaneseq
    %v980 = vshrl.u32 %v979, 7
    %v981 = vsub.s32 0, %v980
    %v982 = vrot.slane %v977, %v981
    %v984 = vadd.f32 %v961, %v982
    %v985 = vadd.f32 %v962, %v982
    %v986 = vadd.f32 %v963, %v982
    %v987 = vadd.f32 %v964, %v982
    %v988 = vadd.f32 %v965, %v982
    %v989 = vadd.f32 %v966, %v982
    %v990 = vadd.f32 %v967, %v982
    %v991 = vadd.f32 %v968, %v982
    %v992 = vadd.f32 %v969, %v982
    %v993 = vadd.f32 %v970, %v982
    %v994 = vadd.f32 %v971, %v982
    %v995 = vadd.f32 %v972, %v982
    %v996 = vadd.f32 %v973, %v982
    %v997 = vadd.f32 %v974, %v982
    %v998 = vadd.f32 %v975, %v982
    %v999 = vadd.f32 %v976, %v982
    %1000 = vst [vmem:[#allocation8] sm:$0xff] %v984
    %1001 = vst [vmem:[#allocation8 + $0x8] sm:$0xff] %v985
    %1002 = vst [vmem:[#allocation8 + $0x10] sm:$0xff] %v986
    %1003 = vst [vmem:[#allocation8 + $0x18] sm:$0xff] %v987
    %1004 = vst [vmem:[#allocation8 + $0x20] sm:$0xff] %v988
    %1005 = vst [vmem:[#allocation8 + $0x28] sm:$0xff] %v989
    %1006 = vst [vmem:[#allocation8 + $0x30] sm:$0xff] %v990
    %1007 = vst [vmem:[#allocation8 + $0x38] sm:$0xff] %v991
    %1008 = vst [vmem:[#allocation8 + $0x40] sm:$0xff] %v992
    %1009 = vst [vmem:[#allocation8 + $0x48] sm:$0xff] %v993
    %1010 = vst [vmem:[#allocation8 + $0x50] sm:$0xff] %v994
    %1011 = vst [vmem:[#allocation8 + $0x58] sm:$0xff] %v995
    %1012 = vst [vmem:[#allocation8 + $0x60] sm:$0xff] %v996
    %1013 = vst [vmem:[#allocation8 + $0x68] sm:$0xff] %v997
    %1014 = vst [vmem:[#allocation8 + $0x70] sm:$0xff] %v998
    %1015 = vst [vmem:[#allocation8 + $0x78] sm:$0xff] %v999
    // Predicated region
    $region42: #{tpu_custom_call.1} parent=1 // pred_check
      _
    $region43: #{tpu_custom_call.1} parent=1 // pred_check_branch
      %1017 = sbr.rel (0) target = $region45
    $region44: #{tpu_custom_call.1} parent=1 // pred_region
      %s1019 = ssub.s32 2048, 2048
      %1020 = vsyncadd [#allocation4], %s1019
      %s1021 = sshll.u32 [#allocation8], 4
      %s1022 = int_to_ptr.vmem [resolvable:$true] %s1021
      %1027 = dma.vmem_to_hbm [thread:$0]  %s1022, 2048, %s7, [#allocation4], 128, 128, 8
    $region45: #{tpu_custom_call.1} parent=1 // pred_fallthru
      _
    // Predicated region
    $region46: #{tpu_custom_call.1} parent=1 // pred_check
      _
    $region47: #{tpu_custom_call.1} parent=1 // pred_check_branch
      %1029 = sbr.rel (0) target = $region49
    $region48: #{tpu_custom_call.1} parent=1 // pred_region
      %1030 = dma.done [#allocation4], 2048
    $region49: #{tpu_custom_call.1} parent=1 // pred_fallthru
      _
    %1031 = vsyncpa [#allocation3], 1
    %1032 = vsyncpa [#allocation6], 1
    %1033 = vsyncpa [#allocation4], 1

</llo_original>
